<compile_context>
chip_gen: v5e
topology: v5e:2x2
jax: 0.10.0
libtpu: 0.0.40
codegen_flags: <defaults>
</compile_context>

<pallas_src>
import functools

import jax
import jax.numpy as jnp
from jax import lax
from jax.experimental import pallas as pl
from jax.experimental.pallas import tpu as pltpu

POWER = 6
REPELCONST = float(5.5 ** POWER)

_SUBLANE = 8            # f32 sublane tile
_LANE = 128             # lane tile
_MAX_BLOCK_COLS = 2048  # column tile cap (multiple of 128)
_TARGET_BLOCK_BYTES = 2 << 20  # ~2 MiB input tile: good on v5e/v6e/v7x


def _choose_tiles(n, m, itemsize):
    """Pick (block_rows, block_cols) targeting ~2 MiB input blocks."""
    # Column tile: keep the full reduction axis when it is modest, otherwise
    # tile it in multiples of 128 lanes (last block masked in-kernel).
    if m <= _MAX_BLOCK_COLS:
        block_cols = m
    else:
        block_cols = _MAX_BLOCK_COLS
    # Row tile: ~2 MiB per input block, multiple of 8 sublanes.
    rows = _TARGET_BLOCK_BYTES // (itemsize * block_cols)
    if rows >= n:
        block_rows = n
    else:
        block_rows = max(_SUBLANE, (min(rows, n) // _SUBLANE) * _SUBLANE)
    return block_rows, block_cols


def _repel_kernel(u_ref, o_ref, acc_ref, *, m_total, block_cols):
    k = pl.program_id(1)

    @pl.when(k == 0)
    def _init():
        acc_ref[...] = jnp.zeros_like(acc_ref)

    u = u_ref[...].astype(jnp.float32)
    # u ** 6 via multiplications (cheaper than a generic pow on the VPU).
    u2 = u * u
    u6 = u2 * u2 * u2
    # repelconst / u**6 ; reciprocal keeps the divide off the VALU hot path.
    val = REPELCONST * pl.reciprocal(u6, approx=False)

    if m_total % block_cols != 0:
        # Last column block is DMA-padded; padded lanes must not contribute.
        col = k * block_cols + lax.broadcasted_iota(jnp.int32, u.shape, 1)
        val = jnp.where(col < m_total, val, 0.0)

    acc_ref[...] += jnp.sum(val, axis=1, keepdims=True)

    @pl.when(k == pl.num_programs(1) - 1)
    def _finalize():
        o_ref[...] = acc_ref[...].astype(o_ref.dtype)


def repel_potential(U, *, block_rows=None, block_cols=None):
    """Pallas implementation of repelPotential.forward.

    U: (n, m) float array (f32 or bf16). Returns (n, 1) float32 array.
    """
    n, m = U.shape
    auto_rows, auto_cols = _choose_tiles(n, m, U.dtype.itemsize)
    if block_rows is None:
        block_rows = auto_rows
    if block_cols is None:
        block_cols = auto_cols

    grid = (pl.cdiv(n, block_rows), pl.cdiv(m, block_cols))

    kernel = functools.partial(
        _repel_kernel, m_total=m, block_cols=block_cols)

    # ~7 VPU ops per element (3 muls for u^6, recip, scale, mask/add, reduce);
    # bytes = streamed input + tiny output. Purely HBM-bandwidth bound.
    cost = pl.CostEstimate(
        flops=7 * n * m,
        transcendentals=0,
        bytes_accessed=U.dtype.itemsize * n * m + 4 * n,
    )

    return pl.pallas_call(
        kernel,
        out_shape=jax.ShapeDtypeStruct((n, 1), jnp.float32),
        grid_spec=pltpu.PrefetchScalarGridSpec(
            num_scalar_prefetch=0,
            grid=grid,
            in_specs=[pl.BlockSpec((block_rows, block_cols),
                                   lambda i, k: (i, k))],
            out_specs=pl.BlockSpec((block_rows, 1), lambda i, k: (i, 0)),
            scratch_shapes=[pltpu.VMEM((block_rows, 1), jnp.float32)],
        ),
        compiler_params=pltpu.CompilerParams(
            dimension_semantics=("parallel", "arbitrary"),
        ),
        cost_estimate=cost,
    )(U)


def _reference(U):
    Uf = U.astype(jnp.float32)
    return jnp.sum(REPELCONST / (Uf ** POWER), axis=1, keepdims=True)


if __name__ == "__main__":
    key = jax.random.PRNGKey(0)
    n, m = 200, 300
    # Keep values away from zero so the potential is finite.
    U = jax.random.uniform(key, (n, m), dtype=jnp.float32,
                           minval=1.0, maxval=3.0)

    # 1) Explicit tiling: exercises row tiling (n % 64 != 0 padded rows) and
    #    masked column tiling (m % 128 != 0) plus the accumulator pattern.
    out_tiled = jax.block_until_ready(
        repel_potential(U, block_rows=64, block_cols=128))

    # 2) Default auto-tiling path (~2 MiB blocks -> single block here).
    out_auto = jax.block_until_ready(repel_potential(U))

    ref = _reference(U)
    assert out_tiled.shape == (n, 1)
    assert out_auto.shape == (n, 1)
    assert jnp.allclose(out_tiled, ref, rtol=2e-5, atol=1e-2), (out_tiled, ref)
    assert jnp.allclose(out_auto, ref, rtol=2e-5, atol=1e-2), (out_auto, ref)

    print("KERNEL_OK")
</pallas_src>

<mosaic_0001>
module attributes {stable_mosaic.version = 11 : i64} {
  func.func @_repel_kernel(%arg0: i32, %arg1: i32, %arg2: memref<64x128xf32, #tpu.memory_space<vmem>>, %arg3: memref<64x1xf32, #tpu.memory_space<vmem>>, %arg4: memref<64x1xf32, #tpu.memory_space<vmem>>) attributes {dimension_semantics = [#tpu.dimension_semantics<parallel>, #tpu.dimension_semantics<arbitrary>], iteration_bounds = array<i64: 4, 3>, scalar_prefetch = 0 : i64, scratch_operands = 1 : i64, tpu.core_type = #tpu.core_type<tc>, window_params = [{transform_indices = @transform_0, window_bounds = array<i64: 64, 128>}, {transform_indices = @transform_1, window_bounds = array<i64: 64, 1>}]} {
    %c0_i32 = arith.constant 0 : i32
    %0 = arith.cmpi eq, %arg1, %c0_i32 : i32
    %1 = arith.extui %0 : i1 to i32
    %c0_i32_0 = arith.constant 0 : i32
    %2 = arith.cmpi ne, %1, %c0_i32_0 : i32
    scf.if %2 {
      %cst_9 = arith.constant 0.000000e+00 : f32
      %26 = vector.broadcast %cst_9 : f32 to vector<64x1xf32>
      %c0_10 = arith.constant 0 : index
      %c0_11 = arith.constant 0 : index
      %27 = vector.load %arg4[%c0_10, %c0_11] : memref<64x1xf32, #tpu.memory_space<vmem>>, vector<64x1xf32>
      tpu.vector_store %arg4[%c0_10, %c0_11], %26 {strides = array<i32>} : memref<64x1xf32, #tpu.memory_space<vmem>>, vector<64x1xf32>,
    } else {
    }
    %c0 = arith.constant 0 : index
    %c0_1 = arith.constant 0 : index
    %3 = vector.load %arg2[%c0, %c0_1] : memref<64x128xf32, #tpu.memory_space<vmem>>, vector<64x128xf32>
    %4 = arith.mulf %3, %3 : vector<64x128xf32>
    %5 = arith.mulf %4, %4 : vector<64x128xf32>
    %6 = arith.mulf %5, %4 : vector<64x128xf32>
    %7 = tpu.reciprocal %6 : vector<64x128xf32> -> vector<64x128xf32>
    %cst = arith.constant 27680.6406 : f32
    %8 = vector.broadcast %cst : f32 to vector<64x128xf32>
    %9 = arith.mulf %8, %7 : vector<64x128xf32>
    %c128_i32 = arith.constant 128 : i32
    %10 = arith.muli %arg1, %c128_i32 : i32
    %11 = tpu.iota {dimensions = array<i32: 1>} : vector<64x128xi32>
    %12 = vector.broadcast %10 : i32 to vector<64x128xi32>
    %13 = arith.addi %12, %11 : vector<64x128xi32>
    %c300_i32 = arith.constant 300 : i32
    %14 = vector.broadcast %c300_i32 : i32 to vector<64x128xi32>
    %15 = arith.cmpi slt, %13, %14 : vector<64x128xi32>
    %cst_2 = arith.constant 0.000000e+00 : f32
    %16 = vector.broadcast %cst_2 : f32 to vector<64x128xf32>
    %17 = arith.select %15, %9, %16 : vector<64x128xi1>, vector<64x128xf32>
    %c0_3 = arith.constant 0 : index
    %c0_4 = arith.constant 0 : index
    %18 = vector.load %arg4[%c0_3, %c0_4] : memref<64x1xf32, #tpu.memory_space<vmem>>, vector<64x1xf32>
    %cst_5 = arith.constant dense<0.000000e+00> : vector<64xf32>
    %19 = vector.multi_reduction <add>, %17, %cst_5 [1] : vector<64x128xf32> to vector<64xf32>
    %20 = vector.shape_cast %19 : vector<64xf32> to vector<64x1xf32>
    %21 = arith.addf %18, %20 : vector<64x1xf32>
    %c0_6 = arith.constant 0 : index
    %c0_7 = arith.constant 0 : index
    %22 = vector.load %arg4[%c0_6, %c0_7] : memref<64x1xf32, #tpu.memory_space<vmem>>, vector<64x1xf32>
    tpu.vector_store %arg4[%c0_6, %c0_7], %21 {strides = array<i32>} : memref<64x1xf32, #tpu.memory_space<vmem>>, vector<64x1xf32>,
    %c2_i32 = arith.constant 2 : i32
    %23 = arith.cmpi eq, %arg1, %c2_i32 : i32
    %24 = arith.extui %23 : i1 to i32
    %c0_i32_8 = arith.constant 0 : i32
    %25 = arith.cmpi ne, %24, %c0_i32_8 : i32
    scf.if %25 {
      %c0_9 = arith.constant 0 : index
      %c0_10 = arith.constant 0 : index
      %26 = vector.load %arg4[%c0_9, %c0_10] : memref<64x1xf32, #tpu.memory_space<vmem>>, vector<64x1xf32>
      %c0_11 = arith.constant 0 : index
      %c0_12 = arith.constant 0 : index
      %27 = vector.load %arg3[%c0_11, %c0_12] : memref<64x1xf32, #tpu.memory_space<vmem>>, vector<64x1xf32>
      tpu.vector_store %arg3[%c0_11, %c0_12], %26 {strides = array<i32>} : memref<64x1xf32, #tpu.memory_space<vmem>>, vector<64x1xf32>,
    } else {
    }
    return
  }
  func.func @transform_0(%arg0: i32, %arg1: i32) -> (i32, i32) {
    %c0_i32 = arith.constant 0 : i32
    return %arg0, %arg1 : i32, i32
  }
  func.func @transform_1(%arg0: i32, %arg1: i32) -> (i32, i32) {
    %c0_i32 = arith.constant 0 : i32
    %c0_i32_0 = arith.constant 0 : i32
    return %arg0, %c0_i32 : i32, i32
  }
}

</mosaic_0001>

<llo_original>
// kernel: tpu_custom_call.1
$region0: #{tpu_custom_call.1}
  #allocation0 [shape = 'u32[]', space=smem, size = 0x4, offset = 0x4, fixed_abs, tag = 'smem constant byte address 0x4 - core index']
  #allocation1 [shape = 'u32[72,128]{1,0:T(1,128)}', space=vmem, size = 0x9000, scoped, tag = 'internal scratch']
  #allocation2 [shape = 'f32[64,1]{1,0:T(8,128)}', space=vmem, size = 0x8000, scoped, tag = 'scratch operand']
  %s0 = inlined_call_operand.hbm [shape: f32[200,300], index: 0, kind: input, shape index: {}]
  %s1 = inlined_call_operand.vmem [shape: f32[200,1], index: 1, kind: output, shape index: {}]
  %s2 = sld [smem:[#allocation0]]
  $region97: #{tpu_custom_call.1} parent=0
    _
  %s4 = ssub.s32 1, %s2
  %s5 = scalar_select 0, %s4, %s2
  $region1: #{tpu_custom_call.1} parent=0
    #allocation3 [shape = 'u8[65536]{0}', space=vmem, size = 0x10000, scoped, tag = 'input window, operand 0']
    #allocation4 [shape = 's32[2]{0}', space=sflag, size = 0x8, scoped, tag = 'scoped memory for tpu_custom_call.1']
    #allocation5 [shape = 'u8[65536]{0}', space=vmem, size = 0x10000, scoped, tag = 'output window, operand 0']
    %6 = vsyncpa [#allocation4], 0
    %s7 = scalar_lea.sflag [#allocation4], 1
    %8 = vsyncpa %s7, 0
    loop: start=0, step=1, limit=14
    $region2: #{tpu_custom_call.1} parent=1 // loop_pre_header
      _
    $region3: #{tpu_custom_call.1} parent=1 // loop_header
      %s10 = sphi 0, %s14
      %p11 = scmp.ge.s32.totalorder %s10, 14
      %s17 = sphi 0, %s29
      %s18 = sphi 0, %s25
      %s19 = sphi 0, %s17
      %s20 = sphi 0, %s18
      %s21 = sphi 0, %s19
      %s22 = sphi 0, %s20
      %s34 = sphi 0, %s36
      %s37 = sphi 0, %s34
      %s38 = sphi 0, %s37
      %s54 = sphi 0, %s38
      %s60 = sphi 0, %s62
      %s63 = sphi 0, %s60
      %s64 = sphi 0, %s63
      %s80 = sphi 0, %s64
    $region4: #{tpu_custom_call.1} parent=1 // loop_header_branch
      %13 = sbr.rel (%p11) target = $region8
    $region5: #{tpu_custom_call.1} parent=1 // loop_body
      %s15 = ssub.s32 %s10, 1
      %s16 = ssub.s32 %s10, 2
      %s23 = sadd.s32 1, %s18
      %p24 = scmp.ge.s32.totalorder %s23, 3
      %s25 = scalar_select %p24, 0, %s23
      %s26 = sadd.s32 1, %s17
      %s27 = scalar_select %p24, %s26, %s17
      %p28 = scmp.ge.s32.totalorder %s27, 4
      %s29 = scalar_select %p28, 0, %s27
      %s30 = ssub.s32 %s17, %s29
      %s31 = ssub.s32 %s18, %s25
      %s32 = sor.u32 %s30, %s31
      %p33 = scmp.eq.s32.totalorder %s32, 0
      %s35 = sadd.s32 %s34, 1
      %s36 = scalar_select %p33, %s34, %s35
      %p39 = pneg %p33
      %p40 = scmp.eq.s32.totalorder %s10, 11
      %p41 = por %p39, %p40
      %p42 = scmp.ne.s32.totalorder %s34, %s37
      %p43 = scmp.eq.s32.totalorder %s10, 0
      %p44 = por %p42, %p43
      %p45 = scmp.ne.s32.totalorder %s34, %s37
      %p46 = scmp.eq.s32.totalorder %s15, 11
      %p47 = por %p45, %p46
      %p48 = scmp.ne.s32.totalorder %s37, %s38
      %p49 = scmp.eq.s32.totalorder %s15, 0
      %p50 = por %p48, %p49
      %p51 = scmp.ne.s32.totalorder %s37, %s38
      %p52 = scmp.eq.s32.totalorder %s16, 11
      %p53 = por %p51, %p52
      %p55 = scmp.ne.s32.totalorder %s38, %s54
      %p56 = scmp.eq.s32.totalorder %s16, 0
      %p57 = por %p55, %p56
      %s58 = ssub.s32 %s17, %s29
      %p59 = scmp.eq.s32.totalorder %s58, 0
      %s61 = sadd.s32 %s60, 1
      %s62 = scalar_select %p59, %s60, %s61
      %p65 = pneg %p59
      %p66 = scmp.eq.s32.totalorder %s10, 11
      %p67 = por %p65, %p66
      %p68 = scmp.ne.s32.totalorder %s60, %s63
      %p69 = scmp.eq.s32.totalorder %s10, 0
      %p70 = por %p68, %p69
      %p71 = scmp.ne.s32.totalorder %s60, %s63
      %p72 = scmp.eq.s32.totalorder %s15, 11
      %p73 = por %p71, %p72
      %p74 = scmp.ne.s32.totalorder %s63, %s64
      %p75 = scmp.eq.s32.totalorder %s15, 0
      %p76 = por %p74, %p75
      %p77 = scmp.ne.s32.totalorder %s63, %s64
      %p78 = scmp.eq.s32.totalorder %s16, 11
      %p79 = por %p77, %p78
      %p81 = scmp.ne.s32.totalorder %s64, %s80
      %p82 = scmp.eq.s32.totalorder %s16, 0
      %p83 = por %p81, %p82
      %p84 = scmp.le.s32.totalorder 1, %s10
      %p85 = scmp.lt.s32.totalorder %s10, 13
      %p86 = pnand %p84, %p85
      %p87 = pneg %p86
      // Predicated region
      $region9: #{tpu_custom_call.1} parent=5 // pred_check
        _
      $region10: #{tpu_custom_call.1} parent=5 // pred_check_branch
        %89 = sbr.rel (%p86) target = $region12
      $region11: #{tpu_custom_call.1} parent=5 // pred_region
        %s90 = ssub.s32 %s10, 1
      $region12: #{tpu_custom_call.1} parent=5 // pred_fallthru
        _
      %p91 = scmp.lt.s32.totalorder %s10, 12
      // Predicated region
      $region13: #{tpu_custom_call.1} parent=5 // pred_check
        %p92 = pneg %p91
      $region14: #{tpu_custom_call.1} parent=5 // pred_check_branch
        %94 = sbr.rel (%p92) target = $region16
      $region15: #{tpu_custom_call.1} parent=5 // pred_region
        // Predicated region
        $region17: #{tpu_custom_call.1} parent=15 // pred_check
          %p95 = pneg %p44
        $region18: #{tpu_custom_call.1} parent=15 // pred_check_branch
          %97 = sbr.rel (%p95) target = $region20
        $region19: #{tpu_custom_call.1} parent=15 // pred_region
          %s98 = sand.u32 %s34, 1
          %s99 = scalar_lea.sflag [#allocation4], %s98
          %s100 = sand.u32 %s34, 1
          %s101 = smul.addr %s100, 64
          %s102 = scalar_lea.vmem [#allocation3], %s101
          %s103 = smul.u32 8, %s17
          %s104 = ssub.s32 25, %s103
          %p105 = scmp.lt.s32.totalorder %s104, 8
          %s106 = scalar_select %p105, %s104, 8
          %s107 = smul.u32 8, %s106
          %s108 = ssub.s32 64, %s107
          %s109 = sshll.u32 %s108, 4
          %110 = vsyncadd %s99, %s109
          %p111 = scmp.ne.s32.totalorder 0, %s107
          %s112 = smul.addr %s103, 3
          %s113 = sadd.s32 %s18, %s112
          %s114 = smul.addr %s113, 8
          %s115 = scalar_lea.hbm %s0, %s114
          %s116 = smul.u32 8, %s106
          %s117 = sshll.u32 %s115, 4
          %s118 = int_to_ptr.hbm [resolvable:$true] %s117
          %s119 = sshll.u32 %s102, 4
          %s120 = int_to_ptr.vmem [resolvable:$true] %s119
          %s121 = sshll.u32 %s116, 4
          %125 = dma.hbm_to_vmem [thread:$0]  (%p111), %s118, %s121, %s120, %s99, 384, 128, 8
        $region20: #{tpu_custom_call.1} parent=15 // pred_fallthru
          _
      $region16: #{tpu_custom_call.1} parent=5 // pred_fallthru
        _
      %p126 = scmp.le.s32.totalorder 1, %s10
      %p127 = scmp.lt.s32.totalorder %s10, 13
      %p128 = pnand %p126, %p127
      %p129 = pneg %p128
      // Predicated region
      $region21: #{tpu_custom_call.1} parent=5 // pred_check
        _
      $region22: #{tpu_custom_call.1} parent=5 // pred_check_branch
        %131 = sbr.rel (%p128) target = $region24
      $region23: #{tpu_custom_call.1} parent=5 // pred_region
        %s132 = ssub.s32 %s10, 1
        %s133 = sand.u32 %s37, 1
        %s134 = scalar_lea.sflag [#allocation4], %s133
        %s135 = sand.u32 %s37, 1
        %s136 = smul.addr %s135, 64
        %s137 = scalar_lea.vmem [#allocation3], %s136
        // Predicated region
        $region25: #{tpu_custom_call.1} parent=23 // pred_check
          %p138 = pneg %p50
        $region26: #{tpu_custom_call.1} parent=23 // pred_check_branch
          %140 = sbr.rel (%p138) target = $region28
        $region27: #{tpu_custom_call.1} parent=23 // pred_region
          %142 = dma.done %s134, 1024
        $region28: #{tpu_custom_call.1} parent=23 // pred_fallthru
          _
        %s143 = sand.u32 %s37, 1
        %s144 = scalar_lea.sflag [#allocation4], %s143
        %s145 = sand.u32 %s37, 1
        %s146 = smul.addr %s145, 64
        %s147 = scalar_lea.vmem [#allocation3], %s146
        %p148 = pneg %p50
        %p149 = pneg %p47
        %p150 = pneg %p76
        %p151 = pneg %p73
        %s152 = sand.u32 %s63, 1
        %s153 = sand.u32 %s63, 1
        %s154 = smul.addr %s153, 64
        %s155 = scalar_lea.vmem [#allocation5], %s154
        %s156 = smul.u32 8, %s19
        %s157 = ssub.s32 25, %s156
        %p158 = scmp.lt.s32.totalorder %s157, 8
        %s159 = scalar_select %p158, %s157, 8
        %s160 = smul.u32 8, %s159
        %s161 = smul.u32 8, %s19
        %s162 = ssub.s32 25, %s161
        %p163 = scmp.lt.s32.totalorder %s162, 8
        %s164 = scalar_select %p163, %s162, 8
        %s165 = smul.u32 8, %s164
        %p166 = scmp.eq.s32.totalorder %s20, 0
        // Predicated region
        $region29: #{tpu_custom_call.1} parent=23 // pred_check
          %p167 = pneg %p166
        $region30: #{tpu_custom_call.1} parent=23 // pred_check_branch
          %169 = sbr.rel (%p167) target = $region32
        $region31: #{tpu_custom_call.1} parent=23 // pred_region
          %vm170 = vcmask 7168
          %171 = vst.msk [vmem:[#allocation2] sm:$0xff] %vm170, 0.0
          %172 = vst.msk [vmem:[#allocation2 + $0x8] sm:$0xff] %vm170, 0.0
          %173 = vst.msk [vmem:[#allocation2 + $0x10] sm:$0xff] %vm170, 0.0
          %174 = vst.msk [vmem:[#allocation2 + $0x18] sm:$0xff] %vm170, 0.0
          %175 = vst.msk [vmem:[#allocation2 + $0x20] sm:$0xff] %vm170, 0.0
          %176 = vst.msk [vmem:[#allocation2 + $0x28] sm:$0xff] %vm170, 0.0
          %177 = vst.msk [vmem:[#allocation2 + $0x30] sm:$0xff] %vm170, 0.0
          %178 = vst.msk [vmem:[#allocation2 + $0x38] sm:$0xff] %vm170, 0.0
        $region32: #{tpu_custom_call.1} parent=23 // pred_fallthru
          _
        %v179 = vld [vmem:[%s137] sm:$0xff]
        %v180 = vld [vmem:[%s137 + $0x8] sm:$0xff]
        %v181 = vld [vmem:[%s137 + $0x10] sm:$0xff]
        %v182 = vld [vmem:[%s137 + $0x18] sm:$0xff]
        %v183 = vld [vmem:[%s137 + $0x20] sm:$0xff]
        %v184 = vld [vmem:[%s137 + $0x28] sm:$0xff]
        %v185 = vld [vmem:[%s137 + $0x30] sm:$0xff]
        %v186 = vld [vmem:[%s137 + $0x38] sm:$0xff]
        %v187 = vmul.f32 %v179, %v179
        %v188 = vmul.f32 %v180, %v180
        %v189 = vmul.f32 %v181, %v181
        %v190 = vmul.f32 %v182, %v182
        %v191 = vmul.f32 %v183, %v183
        %v192 = vmul.f32 %v184, %v184
        %v193 = vmul.f32 %v185, %v185
        %v194 = vmul.f32 %v186, %v186
        %v195 = vmul.f32 %v187, %v187
        %v196 = vmul.f32 %v188, %v188
        %v197 = vmul.f32 %v189, %v189
        %v198 = vmul.f32 %v190, %v190
        %v199 = vmul.f32 %v191, %v191
        %v200 = vmul.f32 %v192, %v192
        %v201 = vmul.f32 %v193, %v193
        %v202 = vmul.f32 %v194, %v194
        %v203 = vmul.f32 %v195, %v187
        %v204 = vmul.f32 %v196, %v188
        %v205 = vmul.f32 %v197, %v189
        %v206 = vmul.f32 %v198, %v190
        %v207 = vmul.f32 %v199, %v191
        %v208 = vmul.f32 %v200, %v192
        %v209 = vmul.f32 %v201, %v193
        %v210 = vmul.f32 %v202, %v194
        %v211 = vrcp.pop %v203
        %v212 = vmul.f32 %v203, %v211
        %v213 = vsub.f32 1.0, %v212
        %v214 = vmul.f32 %v211, %v213
        %v215 = vadd.f32 %v211, %v214
        %vm216 = vweird.f32 %v203
        %vm217 = vweird.f32 %v211
        %vm218 = vmor %vm216, %vm217
        %v219 = vsel %vm218, %v211, %v215
        %v220 = vand.u32 2147483647, %v203
        %vm221 = vcmp.eq.f32.partialorder %v220, 8.507059e+37
        %v222 = vand.u32 %v203, 2147483648
        %v223 = vor.u32 1.1754944e-38, %v222
        %v224 = vsel %vm221, %v223, %v219
        %v225 = vrcp.pop %v204
        %v226 = vmul.f32 %v204, %v225
        %v227 = vsub.f32 1.0, %v226
        %v228 = vmul.f32 %v225, %v227
        %v229 = vadd.f32 %v225, %v228
        %vm230 = vweird.f32 %v204
        %vm231 = vweird.f32 %v225
        %vm232 = vmor %vm230, %vm231
        %v233 = vsel %vm232, %v225, %v229
        %v234 = vand.u32 2147483647, %v204
        %vm235 = vcmp.eq.f32.partialorder %v234, 8.507059e+37
        %v236 = vand.u32 %v204, 2147483648
        %v237 = vor.u32 1.1754944e-38, %v236
        %v238 = vsel %vm235, %v237, %v233
        %v239 = vrcp.pop %v205
        %v240 = vmul.f32 %v205, %v239
        %v241 = vsub.f32 1.0, %v240
        %v242 = vmul.f32 %v239, %v241
        %v243 = vadd.f32 %v239, %v242
        %vm244 = vweird.f32 %v205
        %vm245 = vweird.f32 %v239
        %vm246 = vmor %vm244, %vm245
        %v247 = vsel %vm246, %v239, %v243
        %v248 = vand.u32 2147483647, %v205
        %vm249 = vcmp.eq.f32.partialorder %v248, 8.507059e+37
        %v250 = vand.u32 %v205, 2147483648
        %v251 = vor.u32 1.1754944e-38, %v250
        %v252 = vsel %vm249, %v251, %v247
        %v253 = vrcp.pop %v206
        %v254 = vmul.f32 %v206, %v253
        %v255 = vsub.f32 1.0, %v254
        %v256 = vmul.f32 %v253, %v255
        %v257 = vadd.f32 %v253, %v256
        %vm258 = vweird.f32 %v206
        %vm259 = vweird.f32 %v253
        %vm260 = vmor %vm258, %vm259
        %v261 = vsel %vm260, %v253, %v257
        %v262 = vand.u32 2147483647, %v206
        %vm263 = vcmp.eq.f32.partialorder %v262, 8.507059e+37
        %v264 = vand.u32 %v206, 2147483648
        %v265 = vor.u32 1.1754944e-38, %v264
        %v266 = vsel %vm263, %v265, %v261
        %v267 = vrcp.pop %v207
        %v268 = vmul.f32 %v207, %v267
        %v269 = vsub.f32 1.0, %v268
        %v270 = vmul.f32 %v267, %v269
        %v271 = vadd.f32 %v267, %v270
        %vm272 = vweird.f32 %v207
        %vm273 = vweird.f32 %v267
        %vm274 = vmor %vm272, %vm273
        %v275 = vsel %vm274, %v267, %v271
        %v276 = vand.u32 2147483647, %v207
        %vm277 = vcmp.eq.f32.partialorder %v276, 8.507059e+37
        %v278 = vand.u32 %v207, 2147483648
        %v279 = vor.u32 1.1754944e-38, %v278
        %v280 = vsel %vm277, %v279, %v275
        %v281 = vrcp.pop %v208
        %v282 = vmul.f32 %v208, %v281
        %v283 = vsub.f32 1.0, %v282
        %v284 = vmul.f32 %v281, %v283
        %v285 = vadd.f32 %v281, %v284
        %vm286 = vweird.f32 %v208
        %vm287 = vweird.f32 %v281
        %vm288 = vmor %vm286, %vm287
        %v289 = vsel %vm288, %v281, %v285
        %v290 = vand.u32 2147483647, %v208
        %vm291 = vcmp.eq.f32.partialorder %v290, 8.507059e+37
        %v292 = vand.u32 %v208, 2147483648
        %v293 = vor.u32 1.1754944e-38, %v292
        %v294 = vsel %vm291, %v293, %v289
        %v295 = vrcp.pop %v209
        %v296 = vmul.f32 %v209, %v295
        %v297 = vsub.f32 1.0, %v296
        %v298 = vmul.f32 %v295, %v297
        %v299 = vadd.f32 %v295, %v298
        %vm300 = vweird.f32 %v209
        %vm301 = vweird.f32 %v295
        %vm302 = vmor %vm300, %vm301
        %v303 = vsel %vm302, %v295, %v299
        %v304 = vand.u32 2147483647, %v209
        %vm305 = vcmp.eq.f32.partialorder %v304, 8.507059e+37
        %v306 = vand.u32 %v209, 2147483648
        %v307 = vor.u32 1.1754944e-38, %v306
        %v308 = vsel %vm305, %v307, %v303
        %v309 = vrcp.pop %v210
        %v310 = vmul.f32 %v210, %v309
        %v311 = vsub.f32 1.0, %v310
        %v312 = vmul.f32 %v309, %v311
        %v313 = vadd.f32 %v309, %v312
        %vm314 = vweird.f32 %v210
        %vm315 = vweird.f32 %v309
        %vm316 = vmor %vm314, %vm315
        %v317 = vsel %vm316, %v309, %v313
        %v318 = vand.u32 2147483647, %v210
        %vm319 = vcmp.eq.f32.partialorder %v318, 8.507059e+37
        %v320 = vand.u32 %v210, 2147483648
        %v321 = vor.u32 1.1754944e-38, %v320
        %v322 = vsel %vm319, %v321, %v317
        %v323 = vmul.f32 %v224, 27680.64
        %v324 = vmul.f32 %v238, 27680.64
        %v325 = vmul.f32 %v252, 27680.64
        %v326 = vmul.f32 %v266, 27680.64
        %v327 = vmul.f32 %v280, 27680.64
        %v328 = vmul.f32 %v294, 27680.64
        %v329 = vmul.f32 %v308, 27680.64
        %v330 = vmul.f32 %v322, 27680.64
        %s331 = smul.u32 %s20, 128
        %v332 = vlaneseq
        %v333 = vand.u32 %v332, 127
        %v334 = vstv %s331
        %v335 = vadd.s32 %v334, %v333
        %vm336 = vcmp.lt.s32.totalorder %v335, 300
        %v337 = vsel %vm336, %v323, 0.0
        %v338 = vsel %vm336, %v324, 0.0
        %v339 = vsel %vm336, %v325, 0.0
        %v340 = vsel %vm336, %v326, 0.0
        %v341 = vsel %vm336, %v327, 0.0
        %v342 = vsel %vm336, %v328, 0.0
        %v343 = vsel %vm336, %v329, 0.0
        %v344 = vsel %vm336, %v330, 0.0
        %v345 = vld [vmem:[#allocation2] sm:$0xff]
        %v346 = vld [vmem:[#allocation2 + $0x8] sm:$0xff]
        %v347 = vld [vmem:[#allocation2 + $0x10] sm:$0xff]
        %v348 = vld [vmem:[#allocation2 + $0x18] sm:$0xff]
        %v349 = vld [vmem:[#allocation2 + $0x20] sm:$0xff]
        %v350 = vld [vmem:[#allocation2 + $0x28] sm:$0xff]
        %v351 = vld [vmem:[#allocation2 + $0x30] sm:$0xff]
        %v352 = vld [vmem:[#allocation2 + $0x38] sm:$0xff]
        %353 = vadd.xlane.f32.xlu0 %v337
        %v354 = vpop.xlane.xlu0 %353
        %355 = vadd.xlane.f32.xlu0 %v338
        %v356 = vpop.xlane.xlu0 %355
        %357 = vadd.xlane.f32.xlu0 %v339
        %v358 = vpop.xlane.xlu0 %357
        %359 = vadd.xlane.f32.xlu0 %v340
        %v360 = vpop.xlane.xlu0 %359
        %361 = vadd.xlane.f32.xlu0 %v341
        %v362 = vpop.xlane.xlu0 %361
        %363 = vadd.xlane.f32.xlu0 %v342
        %v364 = vpop.xlane.xlu0 %363
        %365 = vadd.xlane.f32.xlu0 %v343
        %v366 = vpop.xlane.xlu0 %365
        %367 = vadd.xlane.f32.xlu0 %v344
        %v368 = vpop.xlane.xlu0 %367
        %v369 = vadd.f32 %v345, %v354
        %v370 = vadd.f32 %v346, %v356
        %v371 = vadd.f32 %v347, %v358
        %v372 = vadd.f32 %v348, %v360
        %v373 = vadd.f32 %v349, %v362
        %v374 = vadd.f32 %v350, %v364
        %v375 = vadd.f32 %v351, %v366
        %v376 = vadd.f32 %v352, %v368
        %vm377 = vcmask 7168
        %378 = vst.msk [vmem:[#allocation2] sm:$0xff] %vm377, %v369
        %379 = vst.msk [vmem:[#allocation2 + $0x8] sm:$0xff] %vm377, %v370
        %380 = vst.msk [vmem:[#allocation2 + $0x10] sm:$0xff] %vm377, %v371
        %381 = vst.msk [vmem:[#allocation2 + $0x18] sm:$0xff] %vm377, %v372
        %382 = vst.msk [vmem:[#allocation2 + $0x20] sm:$0xff] %vm377, %v373
        %383 = vst.msk [vmem:[#allocation2 + $0x28] sm:$0xff] %vm377, %v374
        %384 = vst.msk [vmem:[#allocation2 + $0x30] sm:$0xff] %vm377, %v375
        %385 = vst.msk [vmem:[#allocation2 + $0x38] sm:$0xff] %vm377, %v376
        %p386 = scmp.eq.s32.totalorder %s20, 2
        // Predicated region
        $region33: #{tpu_custom_call.1} parent=23 // pred_check
          %p387 = pneg %p386
        $region34: #{tpu_custom_call.1} parent=23 // pred_check_branch
          %389 = sbr.rel (%p387) target = $region36
        $region35: #{tpu_custom_call.1} parent=23 // pred_region
          %v390 = vld [vmem:[#allocation2] sm:$0xff]
          %v391 = vld [vmem:[#allocation2 + $0x8] sm:$0xff]
          %v392 = vld [vmem:[#allocation2 + $0x10] sm:$0xff]
          %v393 = vld [vmem:[#allocation2 + $0x18] sm:$0xff]
          %v394 = vld [vmem:[#allocation2 + $0x20] sm:$0xff]
          %v395 = vld [vmem:[#allocation2 + $0x28] sm:$0xff]
          %v396 = vld [vmem:[#allocation2 + $0x30] sm:$0xff]
          %v397 = vld [vmem:[#allocation2 + $0x38] sm:$0xff]
          %398 = vst.msk [vmem:[%s155] sm:$0xff] %vm377, %v390
          %399 = vst.msk [vmem:[%s155 + $0x8] sm:$0xff] %vm377, %v391
          %400 = vst.msk [vmem:[%s155 + $0x10] sm:$0xff] %vm377, %v392
          %401 = vst.msk [vmem:[%s155 + $0x18] sm:$0xff] %vm377, %v393
          %402 = vst.msk [vmem:[%s155 + $0x20] sm:$0xff] %vm377, %v394
          %403 = vst.msk [vmem:[%s155 + $0x28] sm:$0xff] %vm377, %v395
          %404 = vst.msk [vmem:[%s155 + $0x30] sm:$0xff] %vm377, %v396
          %405 = vst.msk [vmem:[%s155 + $0x38] sm:$0xff] %vm377, %v397
        $region36: #{tpu_custom_call.1} parent=23 // pred_fallthru
          _
        %s406 = sand.u32 %s63, 1
        %s407 = sand.u32 %s63, 1
        %s408 = smul.addr %s407, 64
        %s409 = scalar_lea.vmem [#allocation5], %s408
        // Predicated region
        $region37: #{tpu_custom_call.1} parent=23 // pred_check
          %p410 = pneg %p73
        $region38: #{tpu_custom_call.1} parent=23 // pred_check_branch
          %412 = sbr.rel (%p410) target = $region40
        $region39: #{tpu_custom_call.1} parent=23 // pred_region
          %s413 = smul.u32 8, %s19
          %s414 = ssub.s32 25, %s413
          %p415 = scmp.lt.s32.totalorder %s414, 8
          %s416 = scalar_select %p415, %s414, 8
          %s417 = smul.u32 8, %s416
          %p418 = scmp.ne.s32.totalorder 0, %s417
          %s419 = smul.addr %s413, 8
          %s420 = scalar_lea.vmem %s1, %s419
          // Predicated region
          $region41: #{tpu_custom_call.1} parent=39 // pred_check
            %p421 = pneg %p418
          $region42: #{tpu_custom_call.1} parent=39 // pred_check_branch
            %423 = sbr.rel (%p421) target = $region44
          $region43: #{tpu_custom_call.1} parent=39 // pred_region
            // Predicated region
            $region45: #{tpu_custom_call.1} parent=43 // pred_check
              _
            $region46: #{tpu_custom_call.1} parent=43 // pred_check_branch
              %425 = sbr.rel (0) target = $region48
            $region47: #{tpu_custom_call.1} parent=43 // pred_region
              // Predicated region
              $region67: #{tpu_custom_call.1} parent=47 // pred_check
                _
              $region68: #{tpu_custom_call.1} parent=47 // pred_check_branch
                %489 = sbr.rel (0) target = $region70
              $region69: #{tpu_custom_call.1} parent=47 // pred_region
                %s490 = sshrl.u32 %s416, 3
                // While loop
                $region71: #{tpu_custom_call.1} parent=69 // loop_pre_header
                  _
                $region72: #{tpu_custom_call.1} parent=69 // loop_header
                  %s492 = sphi 0, %s494
                  %p493 = scmp.ge.s32.totalorder %s492, %s490
                  %s497 = sphi 0, %s518
                  %s498 = sphi %s409, %s521
                  %s499 = sphi %s420, %s522
                $region73: #{tpu_custom_call.1} parent=69 // loop_header_branch
                  %496 = sbr.rel (%p493) target = $region77
                $region74: #{tpu_custom_call.1} parent=69 // loop_body
                  %v500 = vld [vmem:[%s498] sm:$0xff]
                  %501 = vst [vmem:[%s499] sm:$0xff] %v500
                  %v502 = vld [vmem:[%s498 + $0x8] sm:$0xff]
                  %503 = vst [vmem:[%s499 + $0x8] sm:$0xff] %v502
                  %v504 = vld [vmem:[%s498 + $0x10] sm:$0xff]
                  %505 = vst [vmem:[%s499 + $0x10] sm:$0xff] %v504
                  %v506 = vld [vmem:[%s498 + $0x18] sm:$0xff]
                  %507 = vst [vmem:[%s499 + $0x18] sm:$0xff] %v506
                  %v508 = vld [vmem:[%s498 + $0x20] sm:$0xff]
                  %509 = vst [vmem:[%s499 + $0x20] sm:$0xff] %v508
                  %v510 = vld [vmem:[%s498 + $0x28] sm:$0xff]
                  %511 = vst [vmem:[%s499 + $0x28] sm:$0xff] %v510
                  %v512 = vld [vmem:[%s498 + $0x30] sm:$0xff]
                  %513 = vst [vmem:[%s499 + $0x30] sm:$0xff] %v512
                  %v514 = vld [vmem:[%s498 + $0x38] sm:$0xff]
                  %515 = vst [vmem:[%s499 + $0x38] sm:$0xff] %v514
                  %s516 = sadd.s32 1, %s497
                  %p517 = scmp.ge.s32.totalorder %s516, %s490
                  %s518 = scalar_select %p517, 0, %s516
                  %s519 = smul.u32 %s518, 64
                  %s520 = smul.u32 %s518, 64
                  %s521 = scalar_lea.vmem %s409, %s519 [#allocation5]
                  %s522 = scalar_lea.vmem %s420, %s520
                $region75: #{tpu_custom_call.1} parent=69 // loop_footer
                  %s494 = sadd.s32 %s492, 1
                $region76: #{tpu_custom_call.1} parent=69 // loop_footer_branch
                  %491 = sbr.rel target = $region72
                $region77: #{tpu_custom_call.1} parent=69 // loop_exit
                  _
                %s523 = sshrl.u32 %s416, 3
                %s524 = sand.u32 %s416, 7
                %s525 = smul.u32 %s523, 8
                %s526 = smul.u32 8, %s525
                %s527 = scalar_lea.vmem %s409, %s526 [#allocation5]
                %s528 = smul.u32 8, %s525
                %s529 = scalar_lea.vmem %s420, %s528
                // While loop
                $region78: #{tpu_custom_call.1} parent=69 // loop_pre_header
                  _
                $region79: #{tpu_custom_call.1} parent=69 // loop_header
                  %s531 = sphi 0, %s533
                  %p532 = scmp.ge.s32.totalorder %s531, %s524
                  %s536 = sphi 0, %s543
                  %s537 = sphi %s527, %s546
                  %s538 = sphi %s529, %s547
                $region80: #{tpu_custom_call.1} parent=69 // loop_header_branch
                  %535 = sbr.rel (%p532) target = $region84
                $region81: #{tpu_custom_call.1} parent=69 // loop_body
                  %v539 = vld [vmem:[%s537] sm:$0xff]
                  %540 = vst [vmem:[%s538] sm:$0xff] %v539
                  %s541 = sadd.s32 1, %s536
                  %p542 = scmp.ge.s32.totalorder %s541, %s524
                  %s543 = scalar_select %p542, 0, %s541
                  %s544 = smul.u32 %s543, 8
                  %s545 = smul.u32 %s543, 8
                  %s546 = scalar_lea.vmem %s527, %s544 [#allocation5]
                  %s547 = scalar_lea.vmem %s529, %s545
                $region82: #{tpu_custom_call.1} parent=69 // loop_footer
                  %s533 = sadd.s32 %s531, 1
                $region83: #{tpu_custom_call.1} parent=69 // loop_footer_branch
                  %530 = sbr.rel target = $region79
                $region84: #{tpu_custom_call.1} parent=69 // loop_exit
                  _
              $region70: #{tpu_custom_call.1} parent=47 // pred_fallthru
                _
              // Predicated region
              $region85: #{tpu_custom_call.1} parent=47 // pred_check
                _
              $region86: #{tpu_custom_call.1} parent=47 // pred_check_branch
                %549 = sbr.rel target = $region88
              $region87: #{tpu_custom_call.1} parent=47 // pred_region
                _
              $region88: #{tpu_custom_call.1} parent=47 // pred_fallthru
                _
            $region48: #{tpu_custom_call.1} parent=43 // pred_fallthru
              _
            // Predicated region
            $region49: #{tpu_custom_call.1} parent=43 // pred_check
              _
            $region50: #{tpu_custom_call.1} parent=43 // pred_check_branch
              %427 = sbr.rel target = $region52
            $region51: #{tpu_custom_call.1} parent=43 // pred_region
              %s429 = ssub.s32 256, 1
              %s430 = sshrl.u32 %s416, 3
              // While loop
              $region53: #{tpu_custom_call.1} parent=51 // loop_pre_header
                _
              $region54: #{tpu_custom_call.1} parent=51 // loop_header
                %s432 = sphi 0, %s434
                %p433 = scmp.ge.s32.totalorder %s432, %s430
                %s437 = sphi 0, %s458
                %s438 = sphi %s409, %s461
                %s439 = sphi %s420, %s462
              $region55: #{tpu_custom_call.1} parent=51 // loop_header_branch
                %436 = sbr.rel (%p433) target = $region59
              $region56: #{tpu_custom_call.1} parent=51 // loop_body
                %v440 = vld [vmem:[%s438] sm:%s429]
                %441 = vst [vmem:[%s439] sm:%s429] %v440
                %v442 = vld [vmem:[%s438 + $0x8] sm:%s429]
                %443 = vst [vmem:[%s439 + $0x8] sm:%s429] %v442
                %v444 = vld [vmem:[%s438 + $0x10] sm:%s429]
                %445 = vst [vmem:[%s439 + $0x10] sm:%s429] %v444
                %v446 = vld [vmem:[%s438 + $0x18] sm:%s429]
                %447 = vst [vmem:[%s439 + $0x18] sm:%s429] %v446
                %v448 = vld [vmem:[%s438 + $0x20] sm:%s429]
                %449 = vst [vmem:[%s439 + $0x20] sm:%s429] %v448
                %v450 = vld [vmem:[%s438 + $0x28] sm:%s429]
                %451 = vst [vmem:[%s439 + $0x28] sm:%s429] %v450
                %v452 = vld [vmem:[%s438 + $0x30] sm:%s429]
                %453 = vst [vmem:[%s439 + $0x30] sm:%s429] %v452
                %v454 = vld [vmem:[%s438 + $0x38] sm:%s429]
                %455 = vst [vmem:[%s439 + $0x38] sm:%s429] %v454
                %s456 = sadd.s32 1, %s437
                %p457 = scmp.ge.s32.totalorder %s456, %s430
                %s458 = scalar_select %p457, 0, %s456
                %s459 = smul.u32 %s458, 64
                %s460 = smul.u32 %s458, 64
                %s461 = scalar_lea.vmem %s409, %s459 [#allocation5]
                %s462 = scalar_lea.vmem %s420, %s460
              $region57: #{tpu_custom_call.1} parent=51 // loop_footer
                %s434 = sadd.s32 %s432, 1
              $region58: #{tpu_custom_call.1} parent=51 // loop_footer_branch
                %431 = sbr.rel target = $region54
              $region59: #{tpu_custom_call.1} parent=51 // loop_exit
                _
              %s463 = sshrl.u32 %s416, 3
              %s464 = sand.u32 %s416, 7
              %s465 = smul.u32 %s463, 8
              %s466 = smul.u32 8, %s465
              %s467 = scalar_lea.vmem %s409, %s466 [#allocation5]
              %s468 = smul.u32 8, %s465
              %s469 = scalar_lea.vmem %s420, %s468
              // While loop
              $region60: #{tpu_custom_call.1} parent=51 // loop_pre_header
                _
              $region61: #{tpu_custom_call.1} parent=51 // loop_header
                %s471 = sphi 0, %s473
                %p472 = scmp.ge.s32.totalorder %s471, %s464
                %s476 = sphi 0, %s483
                %s477 = sphi %s467, %s486
                %s478 = sphi %s469, %s487
              $region62: #{tpu_custom_call.1} parent=51 // loop_header_branch
                %475 = sbr.rel (%p472) target = $region66
              $region63: #{tpu_custom_call.1} parent=51 // loop_body
                %v479 = vld [vmem:[%s477] sm:%s429]
                %480 = vst [vmem:[%s478] sm:%s429] %v479
                %s481 = sadd.s32 1, %s476
                %p482 = scmp.ge.s32.totalorder %s481, %s464
                %s483 = scalar_select %p482, 0, %s481
                %s484 = smul.u32 %s483, 8
                %s485 = smul.u32 %s483, 8
                %s486 = scalar_lea.vmem %s467, %s484 [#allocation5]
                %s487 = scalar_lea.vmem %s469, %s485
              $region64: #{tpu_custom_call.1} parent=51 // loop_footer
                %s473 = sadd.s32 %s471, 1
              $region65: #{tpu_custom_call.1} parent=51 // loop_footer_branch
                %470 = sbr.rel target = $region61
              $region66: #{tpu_custom_call.1} parent=51 // loop_exit
                _
            $region52: #{tpu_custom_call.1} parent=43 // pred_fallthru
              _
          $region44: #{tpu_custom_call.1} parent=39 // pred_fallthru
            _
          %550 = vnop
        $region40: #{tpu_custom_call.1} parent=23 // pred_fallthru
          _
      $region24: #{tpu_custom_call.1} parent=5 // pred_fallthru
        _
      %p551 = scmp.le.s32.totalorder 2, %s10
      // Predicated region
      $region89: #{tpu_custom_call.1} parent=5 // pred_check
        %p552 = pneg %p551
      $region90: #{tpu_custom_call.1} parent=5 // pred_check_branch
        %554 = sbr.rel (%p552) target = $region92
      $region91: #{tpu_custom_call.1} parent=5 // pred_region
        %s555 = ssub.s32 %s10, 2
        // Predicated region
        $region93: #{tpu_custom_call.1} parent=91 // pred_check
          %p556 = pneg %p79
        $region94: #{tpu_custom_call.1} parent=91 // pred_check_branch
          %558 = sbr.rel (%p556) target = $region96
        $region95: #{tpu_custom_call.1} parent=91 // pred_region
          %s559 = sand.u32 %s64, 1
          %s560 = sand.u32 %s64, 1
          %s561 = smul.addr %s560, 64
          %s562 = scalar_lea.vmem [#allocation5], %s561
        $region96: #{tpu_custom_call.1} parent=91 // pred_fallthru
          _
      $region92: #{tpu_custom_call.1} parent=5 // pred_fallthru
        _
    $region6: #{tpu_custom_call.1} parent=1 // loop_footer
      %s14 = sadd.s32 1, %s10
    $region7: #{tpu_custom_call.1} parent=1 // loop_footer_branch
      %9 = sbr.rel target = $region3
    $region8: #{tpu_custom_call.1} parent=1 // loop_exit
      _
    %563 = vsyncpa [#allocation4], 1
    %s564 = scalar_lea.sflag [#allocation4], 1
    %565 = vsyncpa %s564, 1

</llo_original>
